<compile_context>
chip_gen: v5e
topology: v5e:2x2
jax: 0.10.0
libtpu: 0.0.40
codegen_flags: <defaults>
</compile_context>

<pallas_src>
import jax
import jax.numpy as jnp
from jax.experimental import pallas as pl
from jax.experimental.pallas import tpu as pltpu


def _framewise_kernel(x_ref, w_ref, b_ref, o_ref):
    # x_ref: (TM, K) f32, w_ref: (K, O) bf16, b_ref: (1, O) f32, o_ref: (TM, O)
    x = x_ref[...].astype(jnp.bfloat16)   # free VPU cast; kernel is DMA-bound
    z = jnp.dot(x, w_ref[...], preferred_element_type=jnp.float32)
    z = z + b_ref[...]                    # f32 bias broadcast over rows
    o_ref[...] = jnp.maximum(z, 0.0).astype(o_ref.dtype)


def _round_up(v, m):
    return ((v + m - 1) // m) * m


def framewise_dim_reduction(x, weight, bias, *, tm=8192):
    """
    x:      (N, 1, F, freq_bins)  float32
    weight: (out_size, freq_bins) float32   (PyTorch nn.Linear layout)
    bias:   (out_size,)           float32
    returns (N, 1, F, out_size)   same dtype as x
    """
    N, one, F, K = x.shape
    assert one == 1
    O, K_w = weight.shape
    assert K_w == K
    M = N * F

    # Glue only: reshape is free (contiguous); weight/bias are tiny (<=10 KB)
    # so their one-time cast / transpose is negligible.  Activations stay f32
    # and are cast to bf16 inside the kernel (no extra HBM pass).
    x2d = x.reshape(M, K)
    w_t = weight.T.astype(jnp.bfloat16)           # (K, O), resident in VMEM
    b2d = bias.reshape(1, O).astype(jnp.float32)  # epilogue stays f32

    # Row-tile size: multiple of 8 sublanes; adapted so the grid has >= 2
    # roughly balanced steps when possible (v7x megacore sharding), capped at
    # `tm` rows (~4 MiB f32 per x block at K=128).
    TM = max(8, min(tm, _round_up(-(-M // 2), 8)))
    grid = (pl.cdiv(M, TM),)

    out2d = pl.pallas_call(
        _framewise_kernel,
        out_shape=jax.ShapeDtypeStruct((M, O), x.dtype),
        grid_spec=pl.GridSpec(
            grid=grid,
            in_specs=[
                # Streaming activation: default depth-2 double-buffering is
                # enough to saturate HBM at multi-MiB blocks.
                pl.BlockSpec((TM, K), lambda i: (i, 0)),
                # Weight / bias: constant index_map -> stay resident in VMEM.
                pl.BlockSpec((K, O), lambda i: (0, 0)),
                pl.BlockSpec((1, O), lambda i: (0, 0)),
            ],
            out_specs=pl.BlockSpec((TM, O), lambda i: (i, 0)),
        ),
        compiler_params=pltpu.CompilerParams(
            # Row blocks are independent -> megacore sharding on v7x.
            dimension_semantics=("parallel",),
            # ~16 MiB working set at TM=8192; raise above v5e's 16 MiB scoped
            # default, still within every generation's physical VMEM.
            vmem_limit_bytes=32 * 1024 * 1024,
        ),
    )(x2d, w_t, b2d)

    return out2d.reshape(N, 1, F, O)


if __name__ == "__main__":
    freq_bins = 128
    out_size = 20
    N, F = 2, 8

    key = jax.random.PRNGKey(0)
    kx, kw, kb = jax.random.split(key, 3)

    x = jax.random.normal(kx, (N, 1, F, freq_bins), dtype=jnp.float32)
    # Deterministic synthetic parameters (same shapes as nn.Linear(128, 20)).
    weight = jax.random.normal(kw, (out_size, freq_bins), dtype=jnp.float32) * 0.05
    bias = jax.random.normal(kb, (out_size,), dtype=jnp.float32) * 0.05

    out = framewise_dim_reduction(x, weight, bias)
    out = jax.block_until_ready(out)

    # Reference check in plain f32 JAX.  Tolerance is loosened because the
    # kernel quantizes activations/weights to bf16 for the MXU (accumulation
    # and the bias/ReLU epilogue stay f32).
    ref = jnp.maximum(
        x.reshape(-1, freq_bins) @ weight.T + bias, 0.0
    ).reshape(N, 1, F, out_size)
    assert out.shape == (N, 1, F, out_size)
    assert out.dtype == x.dtype
    assert jnp.allclose(out, ref, atol=5e-2, rtol=5e-2)

    print("KERNEL_OK")
</pallas_src>

<mosaic_0001>
module attributes {stable_mosaic.version = 11 : i64} {
  func.func @_framewise_kernel(%arg0: i32, %arg1: memref<8x128xf32, #tpu.memory_space<vmem>>, %arg2: memref<128x20xbf16, #tpu.memory_space<vmem>>, %arg3: memref<1x20xf32, #tpu.memory_space<vmem>>, %arg4: memref<8x20xf32, #tpu.memory_space<vmem>>) attributes {dimension_semantics = [#tpu.dimension_semantics<parallel>], iteration_bounds = array<i64: 2>, scalar_prefetch = 0 : i64, scratch_operands = 0 : i64, tpu.core_type = #tpu.core_type<tc>, window_params = [{transform_indices = @transform_0, window_bounds = array<i64: 8, 128>}, {pipeline_mode = #tpu.pipeline_mode<synchronous>, transform_indices = @transform_1, window_bounds = array<i64: 128, 20>}, {pipeline_mode = #tpu.pipeline_mode<synchronous>, transform_indices = @transform_2, window_bounds = array<i64: 1, 20>}, {transform_indices = @transform_3, window_bounds = array<i64: 8, 20>}]} {
    %c0 = arith.constant 0 : index
    %c0_0 = arith.constant 0 : index
    %0 = vector.load %arg1[%c0, %c0_0] : memref<8x128xf32, #tpu.memory_space<vmem>>, vector<8x128xf32>
    %1 = arith.truncf %0 : vector<8x128xf32> to vector<8x128xbf16>
    %c0_1 = arith.constant 0 : index
    %c0_2 = arith.constant 0 : index
    %2 = vector.load %arg2[%c0_1, %c0_2] : memref<128x20xbf16, #tpu.memory_space<vmem>>, vector<128x20xbf16>
    %cst = arith.constant dense<0.000000e+00> : vector<8x20xf32>
    %3 = tpu.matmul %1, %2, %cst {dimension_numbers = #tpu.dot_dimension_numbers<[1], [0], [0], [1], [0, 0, 1, 1], [], []>} : vector<8x128xbf16>, vector<128x20xbf16>, vector<8x20xf32> -> vector<8x20xf32>
    %c0_3 = arith.constant 0 : index
    %c0_4 = arith.constant 0 : index
    %4 = vector.load %arg3[%c0_3, %c0_4] : memref<1x20xf32, #tpu.memory_space<vmem>>, vector<1x20xf32>
    %5 = vector.broadcast %4 : vector<1x20xf32> to vector<8x20xf32>
    %6 = arith.addf %3, %5 : vector<8x20xf32>
    %cst_5 = arith.constant 0.000000e+00 : f32
    %7 = vector.broadcast %cst_5 : f32 to vector<8x20xf32>
    %8 = arith.maximumf %6, %7 : vector<8x20xf32>
    %c0_6 = arith.constant 0 : index
    %c0_7 = arith.constant 0 : index
    %9 = vector.load %arg4[%c0_6, %c0_7] : memref<8x20xf32, #tpu.memory_space<vmem>>, vector<8x20xf32>
    tpu.vector_store %arg4[%c0_6, %c0_7], %8 {strides = array<i32>} : memref<8x20xf32, #tpu.memory_space<vmem>>, vector<8x20xf32>,
    return
  }
  func.func @transform_0(%arg0: i32) -> (i32, i32) {
    %c0_i32 = arith.constant 0 : i32
    %c0_i32_0 = arith.constant 0 : i32
    return %arg0, %c0_i32 : i32, i32
  }
  func.func @transform_1(%arg0: i32) -> (i32, i32) {
    %c0_i32 = arith.constant 0 : i32
    %c0_i32_0 = arith.constant 0 : i32
    %c0_i32_1 = arith.constant 0 : i32
    return %c0_i32, %c0_i32_0 : i32, i32
  }
  func.func @transform_2(%arg0: i32) -> (i32, i32) {
    %c0_i32 = arith.constant 0 : i32
    %c0_i32_0 = arith.constant 0 : i32
    %c0_i32_1 = arith.constant 0 : i32
    return %c0_i32, %c0_i32_0 : i32, i32
  }
  func.func @transform_3(%arg0: i32) -> (i32, i32) {
    %c0_i32 = arith.constant 0 : i32
    %c0_i32_0 = arith.constant 0 : i32
    return %arg0, %c0_i32 : i32, i32
  }
}

</mosaic_0001>

<llo_original>
// kernel: tpu_custom_call.1
$region0: #{tpu_custom_call.1}
  #allocation0 [shape = 'u32[]', space=smem, size = 0x4, offset = 0x4, fixed_abs, tag = 'smem constant byte address 0x4 - core index']
  #allocation1 [shape = 'u32[72,128]{1,0:T(1,128)}', space=vmem, size = 0x9000, scoped, tag = 'internal scratch']
  %s0 = inlined_call_operand.vmem [shape: f32[16,128], index: 0, kind: input, shape index: {}]
  %s1 = inlined_call_operand.vmem [shape: bf16[128,20], index: 1, kind: input, shape index: {}]
  %s2 = inlined_call_operand.vmem [shape: f32[1,20], index: 2, kind: input, shape index: {}]
  %s3 = inlined_call_operand.hbm [shape: f32[16,20], index: 3, kind: output, shape index: {}]
  %s4 = sld [smem:[#allocation0]]
  $region45: #{tpu_custom_call.1} parent=0
    _
  %s6 = ssub.s32 1, %s4
  %s7 = scalar_select 0, %s6, %s4
  $region1: #{tpu_custom_call.1} parent=0
    #allocation2 [shape = 'u8[8192]{0}', space=vmem, size = 0x2000, scoped, tag = 'output window, operand 0']
    #allocation3 [shape = 's32[2]{0}', space=sflag, size = 0x8, scoped, tag = 'scoped memory for tpu_custom_call.1']
    %8 = vsyncpa [#allocation3], 0
    %s9 = scalar_lea.sflag [#allocation3], 1
    %10 = vsyncpa %s9, 0
    loop: start=0, step=1, limit=4
    $region2: #{tpu_custom_call.1} parent=1 // loop_pre_header
      _
    $region3: #{tpu_custom_call.1} parent=1 // loop_header
      %s12 = sphi 0, %s16
      %p13 = scmp.ge.s32.totalorder %s12, 4
      %s22 = sphi 0, %s24
      %s25 = sphi 0, %s22
      %s26 = sphi 0, %s25
      %s42 = sphi 0, %s26
      %s46 = sphi 0, %s46
      %s48 = sphi 0, %s46
      %s49 = sphi 0, %s48
      %s63 = sphi 0, %s49
      %s67 = sphi 0, %s67
      %s69 = sphi 0, %s67
      %s70 = sphi 0, %s69
      %s84 = sphi 0, %s70
      %s90 = sphi 0, %s92
      %s93 = sphi 0, %s90
      %s94 = sphi 0, %s93
      %s110 = sphi 0, %s94
    $region4: #{tpu_custom_call.1} parent=1 // loop_header_branch
      %15 = sbr.rel (%p13) target = $region8
    $region5: #{tpu_custom_call.1} parent=1 // loop_body
      %s17 = ssub.s32 %s12, 1
      %s18 = ssub.s32 %s12, 2
      %s19 = sadd.s32 %s12, 1
      %s20 = ssub.s32 %s12, %s19
      %p21 = scmp.eq.s32.totalorder %s20, 0
      %s23 = sadd.s32 %s22, 1
      %s24 = scalar_select %p21, %s22, %s23
      %p27 = pneg %p21
      %p28 = scmp.eq.s32.totalorder %s12, 1
      %p29 = por %p27, %p28
      %p30 = scmp.ne.s32.totalorder %s22, %s25
      %p31 = scmp.eq.s32.totalorder %s12, 0
      %p32 = por %p30, %p31
      %p33 = scmp.ne.s32.totalorder %s22, %s25
      %p34 = scmp.eq.s32.totalorder %s17, 1
      %p35 = por %p33, %p34
      %p36 = scmp.ne.s32.totalorder %s25, %s26
      %p37 = scmp.eq.s32.totalorder %s17, 0
      %p38 = por %p36, %p37
      %p39 = scmp.ne.s32.totalorder %s25, %s26
      %p40 = scmp.eq.s32.totalorder %s18, 1
      %p41 = por %p39, %p40
      %p43 = scmp.ne.s32.totalorder %s26, %s42
      %p44 = scmp.eq.s32.totalorder %s18, 0
      %p45 = por %p43, %p44
      %s47 = sadd.s32 %s46, 1
      %p50 = scmp.eq.s32.totalorder %s12, 1
      %p51 = scmp.ne.s32.totalorder %s46, %s48
      %p52 = scmp.eq.s32.totalorder %s12, 0
      %p53 = por %p51, %p52
      %p54 = scmp.ne.s32.totalorder %s46, %s48
      %p55 = scmp.eq.s32.totalorder %s17, 1
      %p56 = por %p54, %p55
      %p57 = scmp.ne.s32.totalorder %s48, %s49
      %p58 = scmp.eq.s32.totalorder %s17, 0
      %p59 = por %p57, %p58
      %p60 = scmp.ne.s32.totalorder %s48, %s49
      %p61 = scmp.eq.s32.totalorder %s18, 1
      %p62 = por %p60, %p61
      %p64 = scmp.ne.s32.totalorder %s49, %s63
      %p65 = scmp.eq.s32.totalorder %s18, 0
      %p66 = por %p64, %p65
      %s68 = sadd.s32 %s67, 1
      %p71 = scmp.eq.s32.totalorder %s12, 1
      %p72 = scmp.ne.s32.totalorder %s67, %s69
      %p73 = scmp.eq.s32.totalorder %s12, 0
      %p74 = por %p72, %p73
      %p75 = scmp.ne.s32.totalorder %s67, %s69
      %p76 = scmp.eq.s32.totalorder %s17, 1
      %p77 = por %p75, %p76
      %p78 = scmp.ne.s32.totalorder %s69, %s70
      %p79 = scmp.eq.s32.totalorder %s17, 0
      %p80 = por %p78, %p79
      %p81 = scmp.ne.s32.totalorder %s69, %s70
      %p82 = scmp.eq.s32.totalorder %s18, 1
      %p83 = por %p81, %p82
      %p85 = scmp.ne.s32.totalorder %s70, %s84
      %p86 = scmp.eq.s32.totalorder %s18, 0
      %p87 = por %p85, %p86
      %s88 = ssub.s32 %s12, %s19
      %p89 = scmp.eq.s32.totalorder %s88, 0
      %s91 = sadd.s32 %s90, 1
      %s92 = scalar_select %p89, %s90, %s91
      %p95 = pneg %p89
      %p96 = scmp.eq.s32.totalorder %s12, 1
      %p97 = por %p95, %p96
      %p98 = scmp.ne.s32.totalorder %s90, %s93
      %p99 = scmp.eq.s32.totalorder %s12, 0
      %p100 = por %p98, %p99
      %p101 = scmp.ne.s32.totalorder %s90, %s93
      %p102 = scmp.eq.s32.totalorder %s17, 1
      %p103 = por %p101, %p102
      %p104 = scmp.ne.s32.totalorder %s93, %s94
      %p105 = scmp.eq.s32.totalorder %s17, 0
      %p106 = por %p104, %p105
      %p107 = scmp.ne.s32.totalorder %s93, %s94
      %p108 = scmp.eq.s32.totalorder %s18, 1
      %p109 = por %p107, %p108
      %p111 = scmp.ne.s32.totalorder %s94, %s110
      %p112 = scmp.eq.s32.totalorder %s18, 0
      %p113 = por %p111, %p112
      %p114 = scmp.le.s32.totalorder 1, %s12
      %p115 = scmp.lt.s32.totalorder %s12, 3
      %p116 = pnand %p114, %p115
      %p117 = pneg %p116
      // Predicated region
      $region9: #{tpu_custom_call.1} parent=5 // pred_check
        _
      $region10: #{tpu_custom_call.1} parent=5 // pred_check_branch
        %119 = sbr.rel (%p116) target = $region12
      $region11: #{tpu_custom_call.1} parent=5 // pred_region
        %s120 = ssub.s32 %s12, 1
        // Predicated region
        $region13: #{tpu_custom_call.1} parent=11 // pred_check
          %p121 = pneg %p59
        $region14: #{tpu_custom_call.1} parent=11 // pred_check_branch
          %123 = sbr.rel (%p121) target = $region16
        $region15: #{tpu_custom_call.1} parent=11 // pred_region
          _
        $region16: #{tpu_custom_call.1} parent=11 // pred_fallthru
          _
        // Predicated region
        $region17: #{tpu_custom_call.1} parent=11 // pred_check
          %p124 = pneg %p80
        $region18: #{tpu_custom_call.1} parent=11 // pred_check_branch
          %126 = sbr.rel (%p124) target = $region20
        $region19: #{tpu_custom_call.1} parent=11 // pred_region
          _
        $region20: #{tpu_custom_call.1} parent=11 // pred_fallthru
          _
      $region12: #{tpu_custom_call.1} parent=5 // pred_fallthru
        _
      %p127 = scmp.lt.s32.totalorder %s12, 2
      // Predicated region
      $region21: #{tpu_custom_call.1} parent=5 // pred_check
        %p128 = pneg %p127
      $region22: #{tpu_custom_call.1} parent=5 // pred_check_branch
        %130 = sbr.rel (%p128) target = $region24
      $region23: #{tpu_custom_call.1} parent=5 // pred_region
        // Predicated region
        $region25: #{tpu_custom_call.1} parent=23 // pred_check
          %p131 = pneg %p32
        $region26: #{tpu_custom_call.1} parent=23 // pred_check_branch
          %133 = sbr.rel (%p131) target = $region28
        $region27: #{tpu_custom_call.1} parent=23 // pred_region
          %p134 = scmp.lt.s32.totalorder %s12, 1
          %s135 = scalar_select %p134, %s12, 1
          %s136 = smul.addr %s135, 8
          %s137 = scalar_lea.vmem %s0, %s136
        $region28: #{tpu_custom_call.1} parent=23 // pred_fallthru
          _
      $region24: #{tpu_custom_call.1} parent=5 // pred_fallthru
        _
      %p138 = scmp.le.s32.totalorder 1, %s12
      %p139 = scmp.lt.s32.totalorder %s12, 3
      %p140 = pnand %p138, %p139
      %p141 = pneg %p140
      // Predicated region
      $region29: #{tpu_custom_call.1} parent=5 // pred_check
        _
      $region30: #{tpu_custom_call.1} parent=5 // pred_check_branch
        %143 = sbr.rel (%p140) target = $region32
      $region31: #{tpu_custom_call.1} parent=5 // pred_region
        %s144 = ssub.s32 %s12, 1
        %p145 = scmp.lt.s32.totalorder %s17, 1
        %s146 = scalar_select %p145, %s17, 1
        %s147 = smul.addr %s146, 8
        %s148 = scalar_lea.vmem %s0, %s147
        %p149 = pneg %p38
        %p150 = pneg %p35
        %p151 = pneg %p59
        %p152 = pneg %p56
        %p153 = pneg %p80
        %p154 = pneg %p77
        %p155 = pneg %p106
        %p156 = pneg %p103
        %s157 = sand.u32 %s93, 1
        %s158 = scalar_lea.sflag [#allocation3], %s157
        %s159 = sand.u32 %s93, 1
        %s160 = smul.addr %s159, 8
        %s161 = scalar_lea.vmem [#allocation2], %s160
        %p162 = scmp.lt.s32.totalorder %s17, 1
        %s163 = scalar_select %p162, %s17, 1
        %s164 = smul.addr %s163, 8
        %s165 = scalar_lea.vmem %s0, %s164
        %v166 = vld [vmem:[%s165] sm:$0xff]
        %v167 = vpack.c.bf16 %v166, %v166
        %v168 = vld [vmem:[%s1] sm:$0xf]
        %v169 = vld [vmem:[%s1 + $0x4] sm:$0xf]
        %v170 = vld [vmem:[%s1 + $0x8] sm:$0xf]
        %v171 = vld [vmem:[%s1 + $0xc] sm:$0xf]
        %v172 = vld [vmem:[%s1 + $0x10] sm:$0xf]
        %v173 = vld [vmem:[%s1 + $0x14] sm:$0xf]
        %v174 = vld [vmem:[%s1 + $0x18] sm:$0xf]
        %v175 = vld [vmem:[%s1 + $0x1c] sm:$0xf]
        %v176 = vld [vmem:[%s1 + $0x20] sm:$0xf]
        %v177 = vld [vmem:[%s1 + $0x24] sm:$0xf]
        %v178 = vld [vmem:[%s1 + $0x28] sm:$0xf]
        %v179 = vld [vmem:[%s1 + $0x2c] sm:$0xf]
        %v180 = vld [vmem:[%s1 + $0x30] sm:$0xf]
        %v181 = vld [vmem:[%s1 + $0x34] sm:$0xf]
        %v182 = vld [vmem:[%s1 + $0x38] sm:$0xf]
        %v183 = vld [vmem:[%s1 + $0x3c] sm:$0xf]
        %v184 = vld [vmem:[%s2] sm:$0x1]
        %v186 = vperm.slane %v184, 0
        %v204 = vunpack.c.l.b16 %v168
        %v205 = vunpack.c.l.b16 %v169
        %v206 = vunpack.c.l.b16 %v170
        %v207 = vunpack.c.l.b16 %v171
        %v208 = vunpack.c.l.b16 %v172
        %v209 = vunpack.c.l.b16 %v173
        %v210 = vunpack.c.l.b16 %v174
        %v211 = vunpack.c.l.b16 %v175
        %v212 = vunpack.c.l.b16 %v176
        %v213 = vunpack.c.l.b16 %v177
        %v214 = vunpack.c.l.b16 %v178
        %v215 = vunpack.c.l.b16 %v179
        %v216 = vunpack.c.l.b16 %v180
        %v217 = vunpack.c.l.b16 %v181
        %v218 = vunpack.c.l.b16 %v182
        %v219 = vunpack.c.l.b16 %v183
        %v220 = vpack.c.b16 %v205, %v204
        %v221 = vpack.c.b16 %v207, %v206
        %v222 = vpack.c.b16 %v209, %v208
        %v223 = vpack.c.b16 %v211, %v210
        %v224 = vpack.c.b16 %v213, %v212
        %v225 = vpack.c.b16 %v215, %v214
        %v226 = vpack.c.b16 %v217, %v216
        %v227 = vpack.c.b16 %v219, %v218
        %236 = vmatpush.bf16.msra.mxu0 %v227
        %237 = vmatpush.bf16.msra.mxu0 %v226
        %238 = vmatpush.bf16.msra.mxu0 %v225
        %239 = vmatpush.bf16.msra.mxu0 %v224
        %240 = vmatpush.bf16.msra.mxu0 %v223
        %241 = vmatpush.bf16.msra.mxu0 %v222
        %242 = vmatpush.bf16.msra.mxu0 %v221
        %243 = vmatpush.bf16.msra.mxu0 %v220
        %244 = vmatmul.bf16.gmra.mxu0 %v167
        %v245 = vpop.f32.mrf.mxu0
        %v246 = vadd.f32 %v186, %v245
        %v247 = vpop.f32.mrf.mxu0
        %248 = vdwg.mxu0
        %v249 = vmax.f32 %v246, 0.0
        %vm250 = vcmask 162816
        %251 = vst.msk [vmem:[%s161] sm:$0xff] %vm250, %v249
        %s252 = sand.u32 %s93, 1
        %s253 = scalar_lea.sflag [#allocation3], %s252
        %s254 = sand.u32 %s93, 1
        %s255 = smul.addr %s254, 8
        %s256 = scalar_lea.vmem [#allocation2], %s255
        // Predicated region
        $region33: #{tpu_custom_call.1} parent=31 // pred_check
          %p257 = pneg %p103
        $region34: #{tpu_custom_call.1} parent=31 // pred_check_branch
          %259 = sbr.rel (%p257) target = $region36
        $region35: #{tpu_custom_call.1} parent=31 // pred_region
          %261 = vsyncadd %s253, 0
          %s262 = smul.addr %s17, 8
          %s263 = scalar_lea.hbm %s3, %s262
          %s265 = sshll.u32 %s256, 4
          %s266 = int_to_ptr.vmem [resolvable:$true] %s265
          %s267 = sshll.u32 %s263, 4
          %s268 = int_to_ptr.hbm [resolvable:$true] %s267
          %270 = dma.vmem_to_hbm [thread:$0]  %s266, 128, %s268, %s253
        $region36: #{tpu_custom_call.1} parent=31 // pred_fallthru
          _
      $region32: #{tpu_custom_call.1} parent=5 // pred_fallthru
        _
      %p271 = scmp.le.s32.totalorder 2, %s12
      // Predicated region
      $region37: #{tpu_custom_call.1} parent=5 // pred_check
        %p272 = pneg %p271
      $region38: #{tpu_custom_call.1} parent=5 // pred_check_branch
        %274 = sbr.rel (%p272) target = $region40
      $region39: #{tpu_custom_call.1} parent=5 // pred_region
        %s275 = ssub.s32 %s12, 2
        // Predicated region
        $region41: #{tpu_custom_call.1} parent=39 // pred_check
          %p276 = pneg %p109
        $region42: #{tpu_custom_call.1} parent=39 // pred_check_branch
          %278 = sbr.rel (%p276) target = $region44
        $region43: #{tpu_custom_call.1} parent=39 // pred_region
          %s279 = sand.u32 %s94, 1
          %s280 = scalar_lea.sflag [#allocation3], %s279
          %s281 = sand.u32 %s94, 1
          %s282 = smul.addr %s281, 8
          %s283 = scalar_lea.vmem [#allocation2], %s282
          %285 = dma.done %s280, 128
        $region44: #{tpu_custom_call.1} parent=39 // pred_fallthru
          _
      $region40: #{tpu_custom_call.1} parent=5 // pred_fallthru
        _
    $region6: #{tpu_custom_call.1} parent=1 // loop_footer
      %s16 = sadd.s32 1, %s12
    $region7: #{tpu_custom_call.1} parent=1 // loop_footer_branch
      %11 = sbr.rel target = $region3
    $region8: #{tpu_custom_call.1} parent=1 // loop_exit
      _
    %286 = vsyncpa [#allocation3], 1
    %s287 = scalar_lea.sflag [#allocation3], 1
    %288 = vsyncpa %s287, 1

</llo_original>
